<compile_context>
chip_gen: v7x
topology: tpu7x:2x2x1
jax: 0.10.0
libtpu: 0.0.40
codegen_flags: <defaults>
</compile_context>

<pallas_src>
import jax
import jax.numpy as jnp
from jax.experimental import pallas as pl
from jax.experimental.pallas import tpu as pltpu

IN_DIM = 118        # logical feature count
IN_PAD = 128        # features zero-padded to a full lane tile
HID_DIM = 256
OUT_DIM = 1


def _round_up(n: int, m: int) -> int:
    return (n + m - 1) // m * m


def _bandit_kernel(x_ref, w1t_ref, b1_ref, w2_ref, b2_ref, o_ref):
    # fc1 in transposed orientation: h^T[f, b] = sum_k w1^T[f, k] * x[b, k]
    # (rhs contraction on dim 1 == the q @ k^T MXU pattern, bf16 -> f32 acc).
    ht = jax.lax.dot_general(
        w1t_ref[...], x_ref[...],
        dimension_numbers=(((1,), (1,)), ((), ())),
        preferred_element_type=jnp.float32)                  # (HID, TB) f32
    ht = jnp.maximum(ht + b1_ref[...], 0.0)                  # (HID,1) bcast along lanes

    # fc2: VPU multiply by the (HID, 1) w2 column + sublane reduction.
    # Result is a lane-dense (1, TB) row -> dense stores / contiguous DMA.
    logits = jnp.sum(ht * w2_ref[...], axis=0, keepdims=True)   # (1, TB)
    logits = logits + b2_ref[0, 0]                               # SMEM scalar bias

    # sigmoid: exp on the EUP; approx reciprocal rides the otherwise-idle slot.
    o_ref[...] = pl.reciprocal(1.0 + jnp.exp(-logits), approx=True)


def contextual_neural_bandit_forward(x, w1, b1, w2, b2, *, max_tile=1024):
    """x: [B, 118] f32; returns [B, 1] f32 sigmoid probabilities."""
    B = x.shape[0]
    # Batch tile: multiple of 128 (lane-dense output), capped so the working set
    # stays far under the per-TC VMEM budget (v7x: 64 MiB).  Small B collapses
    # to a single grid step.
    tb = min(max_tile, _round_up(max(B, 1), 128))
    b_pad = _round_up(B, tb)
    num_tiles = b_pad // tb

    # Zero-pad features 118 -> 128 (does not change x @ w1) and batch -> b_pad;
    # bf16 operands for the MXU, f32 accumulation inside the kernel.
    x_p = jnp.zeros((b_pad, IN_PAD), jnp.float32).at[:B, :IN_DIM].set(x)
    x_p = x_p.astype(jnp.bfloat16)
    w1_p = jnp.zeros((IN_PAD, HID_DIM), jnp.float32).at[:IN_DIM, :].set(w1)
    w1_t = jnp.transpose(w1_p).astype(jnp.bfloat16)           # (HID, IN_PAD)
    b1_col = b1.reshape(HID_DIM, 1).astype(jnp.float32)       # (HID, 1)
    w2_col = w2.reshape(HID_DIM, 1).astype(jnp.float32)       # (HID, 1)
    b2_sc = b2.reshape(1, 1).astype(jnp.float32)              # SMEM scalar

    out_row = pl.pallas_call(
        _bandit_kernel,
        out_shape=jax.ShapeDtypeStruct((1, b_pad), jnp.float32),
        grid_spec=pltpu.PrefetchScalarGridSpec(
            num_scalar_prefetch=0,
            grid=(num_tiles,),
            in_specs=[
                # x tiles stream through VMEM (double-buffered by Pallas).
                pl.BlockSpec((tb, IN_PAD), lambda i: (i, 0)),
                # Weights / biases: constant index -> VMEM-resident across steps.
                pl.BlockSpec((HID_DIM, IN_PAD), lambda i: (0, 0)),
                pl.BlockSpec((HID_DIM, 1), lambda i: (0, 0)),
                pl.BlockSpec((HID_DIM, 1), lambda i: (0, 0)),
                # Scalar fc2 bias lives in SMEM.
                pl.BlockSpec(memory_space=pltpu.MemorySpace.SMEM),
            ],
            out_specs=pl.BlockSpec((1, tb), lambda i: (0, i)),
        ),
        compiler_params=pltpu.CompilerParams(
            dimension_semantics=("parallel",),   # shards batch across v7x's 2 TCs
            vmem_limit_bytes=32 * 1024 * 1024,
        ),
    )(x_p, w1_t, b1_col, w2_col, b2_sc)

    return out_row[0, :B].reshape(B, OUT_DIM)


def init_params(key):
    """Deterministic init mimicking PyTorch Linear default U(-1/sqrt(fan_in), +)."""
    k1, k2, k3, k4 = jax.random.split(key, 4)
    bound1 = 1.0 / jnp.sqrt(IN_DIM)
    bound2 = 1.0 / jnp.sqrt(HID_DIM)
    w1 = jax.random.uniform(k1, (IN_DIM, HID_DIM), jnp.float32, -bound1, bound1)
    b1 = jax.random.uniform(k2, (HID_DIM,), jnp.float32, -bound1, bound1)
    w2 = jax.random.uniform(k3, (HID_DIM, OUT_DIM), jnp.float32, -bound2, bound2)
    b2 = jax.random.uniform(k4, (OUT_DIM,), jnp.float32, -bound2, bound2)
    return w1, b1, w2, b2


def _reference(x, w1, b1, w2, b2):
    h = jnp.maximum(x @ w1 + b1, 0.0)
    return jax.nn.sigmoid(h @ w2 + b2)


if __name__ == "__main__":
    key = jax.random.PRNGKey(0)
    kx, kp = jax.random.split(key)
    batch = 8
    x = jax.random.normal(kx, (batch, IN_DIM), jnp.float32)
    w1, b1, w2, b2 = init_params(kp)

    out = contextual_neural_bandit_forward(x, w1, b1, w2, b2)
    out = jax.block_until_ready(out)

    ref = _reference(x, w1, b1, w2, b2)
    assert out.shape == (batch, OUT_DIM)
    # Tolerance loosened vs the pure-f32 reference: fc1 runs in bf16 on the MXU
    # and the sigmoid uses the EUP approximate reciprocal.
    assert jnp.allclose(out, ref, atol=1e-2, rtol=1e-2), "mismatch vs reference"
    print("KERNEL_OK")
</pallas_src>

<mosaic_0001>
module attributes {stable_mosaic.version = 11 : i64} {
  func.func @_bandit_kernel(%arg0: i32, %arg1: memref<128x128xbf16, #tpu.memory_space<vmem>>, %arg2: memref<256x128xbf16, #tpu.memory_space<vmem>>, %arg3: memref<256x1xf32, #tpu.memory_space<vmem>>, %arg4: memref<256x1xf32, #tpu.memory_space<vmem>>, %arg5: memref<1x1xf32, #tpu.memory_space<smem>>, %arg6: memref<1x128xf32, #tpu.memory_space<vmem>>) attributes {dimension_semantics = [#tpu.dimension_semantics<parallel>], iteration_bounds = array<i64: 1>, scalar_prefetch = 0 : i64, scratch_operands = 0 : i64, tpu.core_type = #tpu.core_type<tc>, window_params = [{transform_indices = @transform_0, window_bounds = array<i64: 128, 128>}, {pipeline_mode = #tpu.pipeline_mode<synchronous>, transform_indices = @transform_1, window_bounds = array<i64: 256, 128>}, {pipeline_mode = #tpu.pipeline_mode<synchronous>, transform_indices = @transform_2, window_bounds = array<i64: 256, 1>}, {pipeline_mode = #tpu.pipeline_mode<synchronous>, transform_indices = @transform_3, window_bounds = array<i64: 256, 1>}, {transform_indices = @transform_4, window_bounds = array<i64: 1, 1>}, {transform_indices = @transform_5, window_bounds = array<i64: 1, 128>}]} {
    %c0 = arith.constant 0 : index
    %c0_0 = arith.constant 0 : index
    %0 = vector.load %arg2[%c0, %c0_0] : memref<256x128xbf16, #tpu.memory_space<vmem>>, vector<256x128xbf16>
    %c0_1 = arith.constant 0 : index
    %c0_2 = arith.constant 0 : index
    %1 = vector.load %arg1[%c0_1, %c0_2] : memref<128x128xbf16, #tpu.memory_space<vmem>>, vector<128x128xbf16>
    %cst = arith.constant dense<0.000000e+00> : vector<256x128xf32>
    %2 = tpu.matmul %0, %1, %cst {dimension_numbers = #tpu.dot_dimension_numbers<[1], [1], [0], [0], [0, 0, 1, 0], [], []>} : vector<256x128xbf16>, vector<128x128xbf16>, vector<256x128xf32> -> vector<256x128xf32>
    %c0_3 = arith.constant 0 : index
    %c0_4 = arith.constant 0 : index
    %3 = vector.load %arg3[%c0_3, %c0_4] : memref<256x1xf32, #tpu.memory_space<vmem>>, vector<256x1xf32>
    %4 = vector.broadcast %3 : vector<256x1xf32> to vector<256x128xf32>
    %5 = arith.addf %2, %4 : vector<256x128xf32>
    %cst_5 = arith.constant 0.000000e+00 : f32
    %6 = vector.broadcast %cst_5 : f32 to vector<256x128xf32>
    %7 = arith.maximumf %5, %6 : vector<256x128xf32>
    %c0_6 = arith.constant 0 : index
    %c0_7 = arith.constant 0 : index
    %8 = vector.load %arg4[%c0_6, %c0_7] : memref<256x1xf32, #tpu.memory_space<vmem>>, vector<256x1xf32>
    %9 = vector.broadcast %8 : vector<256x1xf32> to vector<256x128xf32>
    %10 = arith.mulf %7, %9 : vector<256x128xf32>
    %cst_8 = arith.constant dense<0.000000e+00> : vector<128xf32>
    %11 = vector.multi_reduction <add>, %10, %cst_8 [0] : vector<256x128xf32> to vector<128xf32>
    %12 = vector.shape_cast %11 : vector<128xf32> to vector<1x128xf32>
    %c0_9 = arith.constant 0 : index
    %c0_10 = arith.constant 0 : index
    %13 = memref.load %arg5[%c0_9, %c0_10] : memref<1x1xf32, #tpu.memory_space<smem>>
    %14 = vector.broadcast %13 : f32 to vector<1x128xf32>
    %15 = arith.addf %12, %14 : vector<1x128xf32>
    %cst_11 = arith.constant 0.000000e+00 : f32
    %16 = vector.broadcast %cst_11 : f32 to vector<1x128xf32>
    %17 = arith.subf %16, %15 : vector<1x128xf32>
    %18 = math.exp %17 : vector<1x128xf32>
    %cst_12 = arith.constant 1.000000e+00 : f32
    %19 = vector.broadcast %cst_12 : f32 to vector<1x128xf32>
    %20 = arith.addf %19, %18 : vector<1x128xf32>
    %21 = tpu.reciprocal %20 {approx = true} : vector<1x128xf32> -> vector<1x128xf32>
    %c0_13 = arith.constant 0 : index
    %c0_14 = arith.constant 0 : index
    %22 = vector.load %arg6[%c0_13, %c0_14] : memref<1x128xf32, #tpu.memory_space<vmem>>, vector<1x128xf32>
    tpu.vector_store %arg6[%c0_13, %c0_14], %21 {strides = array<i32>} : memref<1x128xf32, #tpu.memory_space<vmem>>, vector<1x128xf32>,
    return
  }
  func.func @transform_0(%arg0: i32) -> (i32, i32) {
    %c0_i32 = arith.constant 0 : i32
    %c0_i32_0 = arith.constant 0 : i32
    return %arg0, %c0_i32 : i32, i32
  }
  func.func @transform_1(%arg0: i32) -> (i32, i32) {
    %c0_i32 = arith.constant 0 : i32
    %c0_i32_0 = arith.constant 0 : i32
    %c0_i32_1 = arith.constant 0 : i32
    return %c0_i32, %c0_i32_0 : i32, i32
  }
  func.func @transform_2(%arg0: i32) -> (i32, i32) {
    %c0_i32 = arith.constant 0 : i32
    %c0_i32_0 = arith.constant 0 : i32
    %c0_i32_1 = arith.constant 0 : i32
    return %c0_i32, %c0_i32_0 : i32, i32
  }
  func.func @transform_3(%arg0: i32) -> (i32, i32) {
    %c0_i32 = arith.constant 0 : i32
    %c0_i32_0 = arith.constant 0 : i32
    %c0_i32_1 = arith.constant 0 : i32
    return %c0_i32, %c0_i32_0 : i32, i32
  }
  func.func @transform_4(%arg0: i32) -> (i32, i32) {
    %c0_i32 = arith.constant 0 : i32
    %c0_i32_0 = arith.constant 0 : i32
    %c0_i32_1 = arith.constant 0 : i32
    return %c0_i32, %c0_i32_0 : i32, i32
  }
  func.func @transform_5(%arg0: i32) -> (i32, i32) {
    %c0_i32 = arith.constant 0 : i32
    %c0_i32_0 = arith.constant 0 : i32
    return %c0_i32, %arg0 : i32, i32
  }
}

</mosaic_0001>

<llo_original>
// kernel: tpu_custom_call.1
$region0: #{tpu_custom_call.1}
  #allocation0 [shape = 'u32[]', space=smem, size = 0x4, offset = 0x4, fixed_abs, tag = 'smem constant byte address 0x4 - core index']
  #allocation1 [shape = 'u32[144,128]{1,0:T(1,128)}', space=vmem, size = 0x12000, scoped, tag = 'internal scratch']
  #allocation2 [shape = 'f32[1,1]{1,0:T(1,128)S(6)}', space=smem, size = 0x200, scoped, tag = 'scoped memory for tpu_custom_call.1']
  %s0 = inlined_call_operand.vmem [shape: bf16[128,128], index: 0, kind: input, shape index: {}]
  %s1 = inlined_call_operand.vmem [shape: bf16[256,128], index: 1, kind: input, shape index: {}]
  %s2 = inlined_call_operand.vmem [shape: f32[256,1], index: 2, kind: input, shape index: {}]
  %s3 = inlined_call_operand.vmem [shape: f32[256,1], index: 3, kind: input, shape index: {}]
  %s4 = inlined_call_operand.<no memory space> [shape: f32[1,1], index: 4, kind: input, shape index: {}]
  %s5 = inlined_call_operand.hbm [shape: f32[1,128], index: 5, kind: output, shape index: {}]
  %s6 = sld [smem:[#allocation0]]
  $region30: #{tpu_custom_call.1} parent=0
    _
  %s8 = ssub.s32 1, %s6
  %s9 = scalar_select 0, %s8, %s6
  %10 = sst [smem:[#allocation2]] %s4
  $region1: #{tpu_custom_call.1} parent=0
    #allocation3 [shape = 'u8[512]{0}', space=vmem, size = 0x400, scoped, tag = 'output window, operand 0, single buffered']
    #allocation4 [shape = 's32[1]{0}', space=sflag, size = 0x4, scoped, tag = 'scoped memory for tpu_custom_call.1']
    %11 = vsyncpa [#allocation4], 0
    // Predicated region
    $region2: #{tpu_custom_call.1} parent=1 // pred_check
      _
    $region3: #{tpu_custom_call.1} parent=1 // pred_check_branch
      %13 = sbr.rel (0) target = $region5
    $region4: #{tpu_custom_call.1} parent=1 // pred_region
      _
    $region5: #{tpu_custom_call.1} parent=1 // pred_fallthru
      _
    // Predicated region
    $region6: #{tpu_custom_call.1} parent=1 // pred_check
      _
    $region7: #{tpu_custom_call.1} parent=1 // pred_check_branch
      %15 = sbr.rel (0) target = $region9
    $region8: #{tpu_custom_call.1} parent=1 // pred_region
      _
    $region9: #{tpu_custom_call.1} parent=1 // pred_fallthru
      _
    // Predicated region
    $region10: #{tpu_custom_call.1} parent=1 // pred_check
      _
    $region11: #{tpu_custom_call.1} parent=1 // pred_check_branch
      %17 = sbr.rel (0) target = $region13
    $region12: #{tpu_custom_call.1} parent=1 // pred_region
      _
    $region13: #{tpu_custom_call.1} parent=1 // pred_fallthru
      _
    // Predicated region
    $region14: #{tpu_custom_call.1} parent=1 // pred_check
      _
    $region15: #{tpu_custom_call.1} parent=1 // pred_check_branch
      %19 = sbr.rel (0) target = $region17
    $region16: #{tpu_custom_call.1} parent=1 // pred_region
      _
    $region17: #{tpu_custom_call.1} parent=1 // pred_fallthru
      _
    // Predicated region
    $region18: #{tpu_custom_call.1} parent=1 // pred_check
      _
    $region19: #{tpu_custom_call.1} parent=1 // pred_check_branch
      %21 = sbr.rel (0) target = $region21
    $region20: #{tpu_custom_call.1} parent=1 // pred_region
      _
    $region21: #{tpu_custom_call.1} parent=1 // pred_fallthru
      _
    %v23 = vld [vmem:[%s1] sm:$0xf]
    %v24 = vld [vmem:[%s1 + $0x4] sm:$0xf]
    %v25 = vld [vmem:[%s1 + $0x8] sm:$0xf]
    %v26 = vld [vmem:[%s1 + $0xc] sm:$0xf]
    %v27 = vld [vmem:[%s1 + $0x10] sm:$0xf]
    %v28 = vld [vmem:[%s1 + $0x14] sm:$0xf]
    %v29 = vld [vmem:[%s1 + $0x18] sm:$0xf]
    %v30 = vld [vmem:[%s1 + $0x1c] sm:$0xf]
    %v31 = vld [vmem:[%s1 + $0x20] sm:$0xf]
    %v32 = vld [vmem:[%s1 + $0x24] sm:$0xf]
    %v33 = vld [vmem:[%s1 + $0x28] sm:$0xf]
    %v34 = vld [vmem:[%s1 + $0x2c] sm:$0xf]
    %v35 = vld [vmem:[%s1 + $0x30] sm:$0xf]
    %v36 = vld [vmem:[%s1 + $0x34] sm:$0xf]
    %v37 = vld [vmem:[%s1 + $0x38] sm:$0xf]
    %v38 = vld [vmem:[%s1 + $0x3c] sm:$0xf]
    %v39 = vld [vmem:[%s1 + $0x40] sm:$0xf]
    %v40 = vld [vmem:[%s1 + $0x44] sm:$0xf]
    %v41 = vld [vmem:[%s1 + $0x48] sm:$0xf]
    %v42 = vld [vmem:[%s1 + $0x4c] sm:$0xf]
    %v43 = vld [vmem:[%s1 + $0x50] sm:$0xf]
    %v44 = vld [vmem:[%s1 + $0x54] sm:$0xf]
    %v45 = vld [vmem:[%s1 + $0x58] sm:$0xf]
    %v46 = vld [vmem:[%s1 + $0x5c] sm:$0xf]
    %v47 = vld [vmem:[%s1 + $0x60] sm:$0xf]
    %v48 = vld [vmem:[%s1 + $0x64] sm:$0xf]
    %v49 = vld [vmem:[%s1 + $0x68] sm:$0xf]
    %v50 = vld [vmem:[%s1 + $0x6c] sm:$0xf]
    %v51 = vld [vmem:[%s1 + $0x70] sm:$0xf]
    %v52 = vld [vmem:[%s1 + $0x74] sm:$0xf]
    %v53 = vld [vmem:[%s1 + $0x78] sm:$0xf]
    %v54 = vld [vmem:[%s1 + $0x7c] sm:$0xf]
    %v55 = vld [vmem:[%s0] sm:$0xf]
    %v56 = vld [vmem:[%s0 + $0x4] sm:$0xf]
    %v57 = vld [vmem:[%s0 + $0x8] sm:$0xf]
    %v58 = vld [vmem:[%s0 + $0xc] sm:$0xf]
    %v59 = vld [vmem:[%s0 + $0x10] sm:$0xf]
    %v60 = vld [vmem:[%s0 + $0x14] sm:$0xf]
    %v61 = vld [vmem:[%s0 + $0x18] sm:$0xf]
    %v62 = vld [vmem:[%s0 + $0x1c] sm:$0xf]
    %v63 = vld [vmem:[%s0 + $0x20] sm:$0xf]
    %v64 = vld [vmem:[%s0 + $0x24] sm:$0xf]
    %v65 = vld [vmem:[%s0 + $0x28] sm:$0xf]
    %v66 = vld [vmem:[%s0 + $0x2c] sm:$0xf]
    %v67 = vld [vmem:[%s0 + $0x30] sm:$0xf]
    %v68 = vld [vmem:[%s0 + $0x34] sm:$0xf]
    %v69 = vld [vmem:[%s0 + $0x38] sm:$0xf]
    %v70 = vld [vmem:[%s0 + $0x3c] sm:$0xf]
    %v71 = vld [vmem:[%s2] sm:$0xff]
    %v72 = vld [vmem:[%s2 + $0x8] sm:$0xff]
    %v73 = vld [vmem:[%s2 + $0x10] sm:$0xff]
    %v74 = vld [vmem:[%s2 + $0x18] sm:$0xff]
    %v75 = vld [vmem:[%s2 + $0x20] sm:$0xff]
    %v76 = vld [vmem:[%s2 + $0x28] sm:$0xff]
    %v77 = vld [vmem:[%s2 + $0x30] sm:$0xff]
    %v78 = vld [vmem:[%s2 + $0x38] sm:$0xff]
    %v79 = vld [vmem:[%s2 + $0x40] sm:$0xff]
    %v80 = vld [vmem:[%s2 + $0x48] sm:$0xff]
    %v81 = vld [vmem:[%s2 + $0x50] sm:$0xff]
    %v82 = vld [vmem:[%s2 + $0x58] sm:$0xff]
    %v83 = vld [vmem:[%s2 + $0x60] sm:$0xff]
    %v84 = vld [vmem:[%s2 + $0x68] sm:$0xff]
    %v85 = vld [vmem:[%s2 + $0x70] sm:$0xff]
    %v86 = vld [vmem:[%s2 + $0x78] sm:$0xff]
    %v87 = vld [vmem:[%s2 + $0x80] sm:$0xff]
    %v88 = vld [vmem:[%s2 + $0x88] sm:$0xff]
    %v89 = vld [vmem:[%s2 + $0x90] sm:$0xff]
    %v90 = vld [vmem:[%s2 + $0x98] sm:$0xff]
    %v91 = vld [vmem:[%s2 + $0xa0] sm:$0xff]
    %v92 = vld [vmem:[%s2 + $0xa8] sm:$0xff]
    %v93 = vld [vmem:[%s2 + $0xb0] sm:$0xff]
    %v94 = vld [vmem:[%s2 + $0xb8] sm:$0xff]
    %v95 = vld [vmem:[%s2 + $0xc0] sm:$0xff]
    %v96 = vld [vmem:[%s2 + $0xc8] sm:$0xff]
    %v97 = vld [vmem:[%s2 + $0xd0] sm:$0xff]
    %v98 = vld [vmem:[%s2 + $0xd8] sm:$0xff]
    %v99 = vld [vmem:[%s2 + $0xe0] sm:$0xff]
    %v100 = vld [vmem:[%s2 + $0xe8] sm:$0xff]
    %v101 = vld [vmem:[%s2 + $0xf0] sm:$0xff]
    %v102 = vld [vmem:[%s2 + $0xf8] sm:$0xff]
    %104 = vset.pattern.permute.xlu0 0
    %105 = vperm.xlu0 %104, %v71
    %v106 = vpop.permute.xlu0 %105
    %109 = vset.pattern.permute.xlu0 0
    %110 = vperm.xlu0 %109, %v72
    %v111 = vpop.permute.xlu0 %110
    %114 = vset.pattern.permute.xlu0 0
    %115 = vperm.xlu0 %114, %v73
    %v116 = vpop.permute.xlu0 %115
    %119 = vset.pattern.permute.xlu0 0
    %120 = vperm.xlu0 %119, %v74
    %v121 = vpop.permute.xlu0 %120
    %124 = vset.pattern.permute.xlu0 0
    %125 = vperm.xlu0 %124, %v75
    %v126 = vpop.permute.xlu0 %125
    %129 = vset.pattern.permute.xlu0 0
    %130 = vperm.xlu0 %129, %v76
    %v131 = vpop.permute.xlu0 %130
    %134 = vset.pattern.permute.xlu0 0
    %135 = vperm.xlu0 %134, %v77
    %v136 = vpop.permute.xlu0 %135
    %139 = vset.pattern.permute.xlu0 0
    %140 = vperm.xlu0 %139, %v78
    %v141 = vpop.permute.xlu0 %140
    %144 = vset.pattern.permute.xlu0 0
    %145 = vperm.xlu0 %144, %v79
    %v146 = vpop.permute.xlu0 %145
    %149 = vset.pattern.permute.xlu0 0
    %150 = vperm.xlu0 %149, %v80
    %v151 = vpop.permute.xlu0 %150
    %154 = vset.pattern.permute.xlu0 0
    %155 = vperm.xlu0 %154, %v81
    %v156 = vpop.permute.xlu0 %155
    %159 = vset.pattern.permute.xlu0 0
    %160 = vperm.xlu0 %159, %v82
    %v161 = vpop.permute.xlu0 %160
    %164 = vset.pattern.permute.xlu0 0
    %165 = vperm.xlu0 %164, %v83
    %v166 = vpop.permute.xlu0 %165
    %169 = vset.pattern.permute.xlu0 0
    %170 = vperm.xlu0 %169, %v84
    %v171 = vpop.permute.xlu0 %170
    %174 = vset.pattern.permute.xlu0 0
    %175 = vperm.xlu0 %174, %v85
    %v176 = vpop.permute.xlu0 %175
    %179 = vset.pattern.permute.xlu0 0
    %180 = vperm.xlu0 %179, %v86
    %v181 = vpop.permute.xlu0 %180
    %184 = vset.pattern.permute.xlu0 0
    %185 = vperm.xlu0 %184, %v87
    %v186 = vpop.permute.xlu0 %185
    %189 = vset.pattern.permute.xlu0 0
    %190 = vperm.xlu0 %189, %v88
    %v191 = vpop.permute.xlu0 %190
    %194 = vset.pattern.permute.xlu0 0
    %195 = vperm.xlu0 %194, %v89
    %v196 = vpop.permute.xlu0 %195
    %199 = vset.pattern.permute.xlu0 0
    %200 = vperm.xlu0 %199, %v90
    %v201 = vpop.permute.xlu0 %200
    %204 = vset.pattern.permute.xlu0 0
    %205 = vperm.xlu0 %204, %v91
    %v206 = vpop.permute.xlu0 %205
    %209 = vset.pattern.permute.xlu0 0
    %210 = vperm.xlu0 %209, %v92
    %v211 = vpop.permute.xlu0 %210
    %214 = vset.pattern.permute.xlu0 0
    %215 = vperm.xlu0 %214, %v93
    %v216 = vpop.permute.xlu0 %215
    %219 = vset.pattern.permute.xlu0 0
    %220 = vperm.xlu0 %219, %v94
    %v221 = vpop.permute.xlu0 %220
    %224 = vset.pattern.permute.xlu0 0
    %225 = vperm.xlu0 %224, %v95
    %v226 = vpop.permute.xlu0 %225
    %229 = vset.pattern.permute.xlu0 0
    %230 = vperm.xlu0 %229, %v96
    %v231 = vpop.permute.xlu0 %230
    %234 = vset.pattern.permute.xlu0 0
    %235 = vperm.xlu0 %234, %v97
    %v236 = vpop.permute.xlu0 %235
    %239 = vset.pattern.permute.xlu0 0
    %240 = vperm.xlu0 %239, %v98
    %v241 = vpop.permute.xlu0 %240
    %244 = vset.pattern.permute.xlu0 0
    %245 = vperm.xlu0 %244, %v99
    %v246 = vpop.permute.xlu0 %245
    %249 = vset.pattern.permute.xlu0 0
    %250 = vperm.xlu0 %249, %v100
    %v251 = vpop.permute.xlu0 %250
    %254 = vset.pattern.permute.xlu0 0
    %255 = vperm.xlu0 %254, %v101
    %v256 = vpop.permute.xlu0 %255
    %259 = vset.pattern.permute.xlu0 0
    %260 = vperm.xlu0 %259, %v102
    %v261 = vpop.permute.xlu0 %260
    %v295 = vunpack.c.l.b16 %v23
    %v296 = vunpack.c.l.b16 %v24
    %v297 = vunpack.c.l.b16 %v25
    %v298 = vunpack.c.l.b16 %v26
    %v299 = vunpack.c.l.b16 %v27
    %v300 = vunpack.c.l.b16 %v28
    %v301 = vunpack.c.l.b16 %v29
    %v302 = vunpack.c.l.b16 %v30
    %v303 = vunpack.c.l.b16 %v31
    %v304 = vunpack.c.l.b16 %v32
    %v305 = vunpack.c.l.b16 %v33
    %v306 = vunpack.c.l.b16 %v34
    %v307 = vunpack.c.l.b16 %v35
    %v308 = vunpack.c.l.b16 %v36
    %v309 = vunpack.c.l.b16 %v37
    %v310 = vunpack.c.l.b16 %v38
    %v311 = vunpack.c.l.b16 %v39
    %v312 = vunpack.c.l.b16 %v40
    %v313 = vunpack.c.l.b16 %v41
    %v314 = vunpack.c.l.b16 %v42
    %v315 = vunpack.c.l.b16 %v43
    %v316 = vunpack.c.l.b16 %v44
    %v317 = vunpack.c.l.b16 %v45
    %v318 = vunpack.c.l.b16 %v46
    %v319 = vunpack.c.l.b16 %v47
    %v320 = vunpack.c.l.b16 %v48
    %v321 = vunpack.c.l.b16 %v49
    %v322 = vunpack.c.l.b16 %v50
    %v323 = vunpack.c.l.b16 %v51
    %v324 = vunpack.c.l.b16 %v52
    %v325 = vunpack.c.l.b16 %v53
    %v326 = vunpack.c.l.b16 %v54
    %v327 = vpack.c.b16 %v296, %v295
    %v328 = vpack.c.b16 %v298, %v297
    %v329 = vpack.c.b16 %v300, %v299
    %v330 = vpack.c.b16 %v302, %v301
    %v331 = vpack.c.b16 %v304, %v303
    %v332 = vpack.c.b16 %v306, %v305
    %v333 = vpack.c.b16 %v308, %v307
    %v334 = vpack.c.b16 %v310, %v309
    %v335 = vpack.c.b16 %v312, %v311
    %v336 = vpack.c.b16 %v314, %v313
    %v337 = vpack.c.b16 %v316, %v315
    %v338 = vpack.c.b16 %v318, %v317
    %v339 = vpack.c.b16 %v320, %v319
    %v340 = vpack.c.b16 %v322, %v321
    %v341 = vpack.c.b16 %v324, %v323
    %v342 = vpack.c.b16 %v326, %v325
    %v375 = vunpack.c.l.b16 %v55
    %v376 = vunpack.c.l.b16 %v56
    %v377 = vunpack.c.l.b16 %v57
    %v378 = vunpack.c.l.b16 %v58
    %v379 = vunpack.c.l.b16 %v59
    %v380 = vunpack.c.l.b16 %v60
    %v381 = vunpack.c.l.b16 %v61
    %v382 = vunpack.c.l.b16 %v62
    %v383 = vunpack.c.l.b16 %v63
    %v384 = vunpack.c.l.b16 %v64
    %v385 = vunpack.c.l.b16 %v65
    %v386 = vunpack.c.l.b16 %v66
    %v387 = vunpack.c.l.b16 %v67
    %v388 = vunpack.c.l.b16 %v68
    %v389 = vunpack.c.l.b16 %v69
    %v390 = vunpack.c.l.b16 %v70
    %v391 = vpack.c.b16 %v376, %v375
    %v392 = vpack.c.b16 %v378, %v377
    %v393 = vpack.c.b16 %v380, %v379
    %v394 = vpack.c.b16 %v382, %v381
    %v395 = vpack.c.b16 %v384, %v383
    %v396 = vpack.c.b16 %v386, %v385
    %v397 = vpack.c.b16 %v388, %v387
    %v398 = vpack.c.b16 %v390, %v389
    %407 = vmatprep.subr.bf16.mxu0 0
    %408 = vmatpush1.bf16.xpose.msra.mxu0 %v391
    %409 = vmatprep.subr.bf16.mxu0 0
    %410 = vmatpush1.bf16.xpose.msra.mxu0 %v392
    %411 = vmatprep.subr.bf16.mxu0 0
    %412 = vmatpush1.bf16.xpose.msra.mxu0 %v393
    %413 = vmatprep.subr.bf16.mxu0 0
    %414 = vmatpush1.bf16.xpose.msra.mxu0 %v394
    %415 = vmatprep.subr.bf16.mxu0 0
    %416 = vmatpush1.bf16.xpose.msra.mxu0 %v395
    %417 = vmatprep.subr.bf16.mxu0 0
    %418 = vmatpush1.bf16.xpose.msra.mxu0 %v396
    %419 = vmatprep.subr.bf16.mxu0 0
    %420 = vmatpush1.bf16.xpose.msra.mxu0 %v397
    %421 = vmatprep.subr.bf16.mxu0 0
    %422 = vmatpush1.bf16.xpose.msra.mxu0 %v398
    %423 = vmatprep.subr.bf16.mxu0 0
    %424 = vmatpush1.bf16.xpose.msra.mxu0 0
    %425 = vmatprep.subr.bf16.mxu0 0
    %426 = vmatpush1.bf16.xpose.msra.mxu0 0
    %427 = vmatprep.subr.bf16.mxu0 0
    %428 = vmatpush1.bf16.xpose.msra.mxu0 0
    %429 = vmatprep.subr.bf16.mxu0 0
    %430 = vmatpush1.bf16.xpose.msra.mxu0 0
    %431 = vmatprep.subr.bf16.mxu0 0
    %432 = vmatpush1.bf16.xpose.msra.mxu0 0
    %433 = vmatprep.subr.bf16.mxu0 0
    %434 = vmatpush1.bf16.xpose.msra.mxu0 0
    %435 = vmatprep.subr.bf16.mxu0 0
    %436 = vmatpush1.bf16.xpose.msra.mxu0 0
    %437 = vmatprep.subr.bf16.mxu0 0
    %438 = vmatpush1.bf16.xpose.msra.mxu0 0
    %439 = vmatprep.mubr.bf16.mxu0 0
    %440 = vmatmul.mubr.bf16.gmra.mrb[0].mxu0 %v327
    %v441 = vpop.f32.mrb[0].mxu0
    %v442 = vadd.f32 %v106, %v441
    %v443 = vpop.f32.mrb[0].mxu0
    %v444 = vpop.f32.mrb[0].mxu0
    %v445 = vadd.f32 %v111, %v444
    %v446 = vpop.f32.mrb[0].mxu0
    %447 = vmatprep.mubr.bf16.mxu0 0
    %448 = vmatmul.mubr.bf16.gmra.mrb[0].mxu0 %v328
    %v449 = vpop.f32.mrb[0].mxu0
    %v450 = vadd.f32 %v116, %v449
    %v451 = vpop.f32.mrb[0].mxu0
    %v452 = vpop.f32.mrb[0].mxu0
    %v453 = vadd.f32 %v121, %v452
    %v454 = vpop.f32.mrb[0].mxu0
    %455 = vmatprep.mubr.bf16.mxu0 0
    %456 = vmatmul.mubr.bf16.gmra.mrb[0].mxu0 %v329
    %v457 = vpop.f32.mrb[0].mxu0
    %v458 = vadd.f32 %v126, %v457
    %v459 = vpop.f32.mrb[0].mxu0
    %v460 = vpop.f32.mrb[0].mxu0
    %v461 = vadd.f32 %v131, %v460
    %v462 = vpop.f32.mrb[0].mxu0
    %463 = vmatprep.mubr.bf16.mxu0 0
    %464 = vmatmul.mubr.bf16.gmra.mrb[0].mxu0 %v330
    %v465 = vpop.f32.mrb[0].mxu0
    %v466 = vadd.f32 %v136, %v465
    %v467 = vpop.f32.mrb[0].mxu0
    %v468 = vpop.f32.mrb[0].mxu0
    %v469 = vadd.f32 %v141, %v468
    %v470 = vpop.f32.mrb[0].mxu0
    %471 = vmatprep.mubr.bf16.mxu0 0
    %472 = vmatmul.mubr.bf16.gmra.mrb[0].mxu0 %v331
    %v473 = vpop.f32.mrb[0].mxu0
    %v474 = vadd.f32 %v146, %v473
    %v475 = vpop.f32.mrb[0].mxu0
    %v476 = vpop.f32.mrb[0].mxu0
    %v477 = vadd.f32 %v151, %v476
    %v478 = vpop.f32.mrb[0].mxu0
    %479 = vmatprep.mubr.bf16.mxu0 0
    %480 = vmatmul.mubr.bf16.gmra.mrb[0].mxu0 %v332
    %v481 = vpop.f32.mrb[0].mxu0
    %v482 = vadd.f32 %v156, %v481
    %v483 = vpop.f32.mrb[0].mxu0
    %v484 = vpop.f32.mrb[0].mxu0
    %v485 = vadd.f32 %v161, %v484
    %v486 = vpop.f32.mrb[0].mxu0
    %487 = vmatprep.mubr.bf16.mxu0 0
    %488 = vmatmul.mubr.bf16.gmra.mrb[0].mxu0 %v333
    %v489 = vpop.f32.mrb[0].mxu0
    %v490 = vadd.f32 %v166, %v489
    %v491 = vpop.f32.mrb[0].mxu0
    %v492 = vpop.f32.mrb[0].mxu0
    %v493 = vadd.f32 %v171, %v492
    %v494 = vpop.f32.mrb[0].mxu0
    %495 = vmatprep.mubr.bf16.mxu0 0
    %496 = vmatmul.mubr.bf16.gmra.mrb[0].mxu0 %v334
    %v497 = vpop.f32.mrb[0].mxu0
    %v498 = vadd.f32 %v176, %v497
    %v499 = vpop.f32.mrb[0].mxu0
    %v500 = vpop.f32.mrb[0].mxu0
    %v501 = vadd.f32 %v181, %v500
    %v502 = vpop.f32.mrb[0].mxu0
    %503 = vmatprep.mubr.bf16.mxu0 0
    %504 = vmatmul.mubr.bf16.gmra.mrb[0].mxu0 %v335
    %v505 = vpop.f32.mrb[0].mxu0
    %v506 = vadd.f32 %v186, %v505
    %v507 = vpop.f32.mrb[0].mxu0
    %v508 = vpop.f32.mrb[0].mxu0
    %v509 = vadd.f32 %v191, %v508
    %v510 = vpop.f32.mrb[0].mxu0
    %511 = vmatprep.mubr.bf16.mxu0 0
    %512 = vmatmul.mubr.bf16.gmra.mrb[0].mxu0 %v336
    %v513 = vpop.f32.mrb[0].mxu0
    %v514 = vadd.f32 %v196, %v513
    %v515 = vpop.f32.mrb[0].mxu0
    %v516 = vpop.f32.mrb[0].mxu0
    %v517 = vadd.f32 %v201, %v516
    %v518 = vpop.f32.mrb[0].mxu0
    %519 = vmatprep.mubr.bf16.mxu0 0
    %520 = vmatmul.mubr.bf16.gmra.mrb[0].mxu0 %v337
    %v521 = vpop.f32.mrb[0].mxu0
    %v522 = vadd.f32 %v206, %v521
    %v523 = vpop.f32.mrb[0].mxu0
    %v524 = vpop.f32.mrb[0].mxu0
    %v525 = vadd.f32 %v211, %v524
    %v526 = vpop.f32.mrb[0].mxu0
    %527 = vmatprep.mubr.bf16.mxu0 0
    %528 = vmatmul.mubr.bf16.gmra.mrb[0].mxu0 %v338
    %v529 = vpop.f32.mrb[0].mxu0
    %v530 = vadd.f32 %v216, %v529
    %v531 = vpop.f32.mrb[0].mxu0
    %v532 = vpop.f32.mrb[0].mxu0
    %v533 = vadd.f32 %v221, %v532
    %v534 = vpop.f32.mrb[0].mxu0
    %535 = vmatprep.mubr.bf16.mxu0 0
    %536 = vmatmul.mubr.bf16.gmra.mrb[0].mxu0 %v339
    %v537 = vpop.f32.mrb[0].mxu0
    %v538 = vadd.f32 %v226, %v537
    %v539 = vpop.f32.mrb[0].mxu0
    %v540 = vpop.f32.mrb[0].mxu0
    %v541 = vadd.f32 %v231, %v540
    %v542 = vpop.f32.mrb[0].mxu0
    %543 = vmatprep.mubr.bf16.mxu0 0
    %544 = vmatmul.mubr.bf16.gmra.mrb[0].mxu0 %v340
    %v545 = vpop.f32.mrb[0].mxu0
    %v546 = vadd.f32 %v236, %v545
    %v547 = vpop.f32.mrb[0].mxu0
    %v548 = vpop.f32.mrb[0].mxu0
    %v549 = vadd.f32 %v241, %v548
    %v550 = vpop.f32.mrb[0].mxu0
    %551 = vmatprep.mubr.bf16.mxu0 0
    %552 = vmatmul.mubr.bf16.gmra.mrb[0].mxu0 %v341
    %v553 = vpop.f32.mrb[0].mxu0
    %v554 = vadd.f32 %v246, %v553
    %v555 = vpop.f32.mrb[0].mxu0
    %v556 = vpop.f32.mrb[0].mxu0
    %v557 = vadd.f32 %v251, %v556
    %v558 = vpop.f32.mrb[0].mxu0
    %559 = vmatprep.mubr.bf16.mxu0 0
    %560 = vmatmul.mubr.bf16.gmra.mrb[0].mxu0 %v342
    %v561 = vpop.f32.mrb[0].mxu0
    %v562 = vadd.f32 %v256, %v561
    %v563 = vpop.f32.mrb[0].mxu0
    %v564 = vpop.f32.mrb[0].mxu0
    %v565 = vadd.f32 %v261, %v564
    %v566 = vpop.f32.mrb[0].mxu0
    %567 = vdwg.mxu0
    %v568 = vmax.f32 %v442, 0.0
    %v569 = vmax.f32 %v445, 0.0
    %v570 = vmax.f32 %v450, 0.0
    %v571 = vmax.f32 %v453, 0.0
    %v572 = vmax.f32 %v458, 0.0
    %v573 = vmax.f32 %v461, 0.0
    %v574 = vmax.f32 %v466, 0.0
    %v575 = vmax.f32 %v469, 0.0
    %v576 = vmax.f32 %v474, 0.0
    %v577 = vmax.f32 %v477, 0.0
    %v578 = vmax.f32 %v482, 0.0
    %v579 = vmax.f32 %v485, 0.0
    %v580 = vmax.f32 %v490, 0.0
    %v581 = vmax.f32 %v493, 0.0
    %v582 = vmax.f32 %v498, 0.0
    %v583 = vmax.f32 %v501, 0.0
    %v584 = vmax.f32 %v506, 0.0
    %v585 = vmax.f32 %v509, 0.0
    %v586 = vmax.f32 %v514, 0.0
    %v587 = vmax.f32 %v517, 0.0
    %v588 = vmax.f32 %v522, 0.0
    %v589 = vmax.f32 %v525, 0.0
    %v590 = vmax.f32 %v530, 0.0
    %v591 = vmax.f32 %v533, 0.0
    %v592 = vmax.f32 %v538, 0.0
    %v593 = vmax.f32 %v541, 0.0
    %v594 = vmax.f32 %v546, 0.0
    %v595 = vmax.f32 %v549, 0.0
    %v596 = vmax.f32 %v554, 0.0
    %v597 = vmax.f32 %v557, 0.0
    %v598 = vmax.f32 %v562, 0.0
    %v599 = vmax.f32 %v565, 0.0
    %v600 = vld [vmem:[%s3] sm:$0xff]
    %v601 = vld [vmem:[%s3 + $0x8] sm:$0xff]
    %v602 = vld [vmem:[%s3 + $0x10] sm:$0xff]
    %v603 = vld [vmem:[%s3 + $0x18] sm:$0xff]
    %v604 = vld [vmem:[%s3 + $0x20] sm:$0xff]
    %v605 = vld [vmem:[%s3 + $0x28] sm:$0xff]
    %v606 = vld [vmem:[%s3 + $0x30] sm:$0xff]
    %v607 = vld [vmem:[%s3 + $0x38] sm:$0xff]
    %v608 = vld [vmem:[%s3 + $0x40] sm:$0xff]
    %v609 = vld [vmem:[%s3 + $0x48] sm:$0xff]
    %v610 = vld [vmem:[%s3 + $0x50] sm:$0xff]
    %v611 = vld [vmem:[%s3 + $0x58] sm:$0xff]
    %v612 = vld [vmem:[%s3 + $0x60] sm:$0xff]
    %v613 = vld [vmem:[%s3 + $0x68] sm:$0xff]
    %v614 = vld [vmem:[%s3 + $0x70] sm:$0xff]
    %v615 = vld [vmem:[%s3 + $0x78] sm:$0xff]
    %v616 = vld [vmem:[%s3 + $0x80] sm:$0xff]
    %v617 = vld [vmem:[%s3 + $0x88] sm:$0xff]
    %v618 = vld [vmem:[%s3 + $0x90] sm:$0xff]
    %v619 = vld [vmem:[%s3 + $0x98] sm:$0xff]
    %v620 = vld [vmem:[%s3 + $0xa0] sm:$0xff]
    %v621 = vld [vmem:[%s3 + $0xa8] sm:$0xff]
    %v622 = vld [vmem:[%s3 + $0xb0] sm:$0xff]
    %v623 = vld [vmem:[%s3 + $0xb8] sm:$0xff]
    %v624 = vld [vmem:[%s3 + $0xc0] sm:$0xff]
    %v625 = vld [vmem:[%s3 + $0xc8] sm:$0xff]
    %v626 = vld [vmem:[%s3 + $0xd0] sm:$0xff]
    %v627 = vld [vmem:[%s3 + $0xd8] sm:$0xff]
    %v628 = vld [vmem:[%s3 + $0xe0] sm:$0xff]
    %v629 = vld [vmem:[%s3 + $0xe8] sm:$0xff]
    %v630 = vld [vmem:[%s3 + $0xf0] sm:$0xff]
    %v631 = vld [vmem:[%s3 + $0xf8] sm:$0xff]
    %633 = vset.pattern.permute.xlu0 0
    %634 = vperm.xlu0 %633, %v600
    %v635 = vpop.permute.xlu0 %634
    %638 = vset.pattern.permute.xlu0 0
    %639 = vperm.xlu0 %638, %v601
    %v640 = vpop.permute.xlu0 %639
    %643 = vset.pattern.permute.xlu0 0
    %644 = vperm.xlu0 %643, %v602
    %v645 = vpop.permute.xlu0 %644
    %648 = vset.pattern.permute.xlu0 0
    %649 = vperm.xlu0 %648, %v603
    %v650 = vpop.permute.xlu0 %649
    %653 = vset.pattern.permute.xlu0 0
    %654 = vperm.xlu0 %653, %v604
    %v655 = vpop.permute.xlu0 %654
    %658 = vset.pattern.permute.xlu0 0
    %659 = vperm.xlu0 %658, %v605
    %v660 = vpop.permute.xlu0 %659
    %663 = vset.pattern.permute.xlu0 0
    %664 = vperm.xlu0 %663, %v606
    %v665 = vpop.permute.xlu0 %664
    %668 = vset.pattern.permute.xlu0 0
    %669 = vperm.xlu0 %668, %v607
    %v670 = vpop.permute.xlu0 %669
    %673 = vset.pattern.permute.xlu0 0
    %674 = vperm.xlu0 %673, %v608
    %v675 = vpop.permute.xlu0 %674
    %678 = vset.pattern.permute.xlu0 0
    %679 = vperm.xlu0 %678, %v609
    %v680 = vpop.permute.xlu0 %679
    %683 = vset.pattern.permute.xlu0 0
    %684 = vperm.xlu0 %683, %v610
    %v685 = vpop.permute.xlu0 %684
    %688 = vset.pattern.permute.xlu0 0
    %689 = vperm.xlu0 %688, %v611
    %v690 = vpop.permute.xlu0 %689
    %693 = vset.pattern.permute.xlu0 0
    %694 = vperm.xlu0 %693, %v612
    %v695 = vpop.permute.xlu0 %694
    %698 = vset.pattern.permute.xlu0 0
    %699 = vperm.xlu0 %698, %v613
    %v700 = vpop.permute.xlu0 %699
    %703 = vset.pattern.permute.xlu0 0
    %704 = vperm.xlu0 %703, %v614
    %v705 = vpop.permute.xlu0 %704
    %708 = vset.pattern.permute.xlu0 0
    %709 = vperm.xlu0 %708, %v615
    %v710 = vpop.permute.xlu0 %709
    %713 = vset.pattern.permute.xlu0 0
    %714 = vperm.xlu0 %713, %v616
    %v715 = vpop.permute.xlu0 %714
    %718 = vset.pattern.permute.xlu0 0
    %719 = vperm.xlu0 %718, %v617
    %v720 = vpop.permute.xlu0 %719
    %723 = vset.pattern.permute.xlu0 0
    %724 = vperm.xlu0 %723, %v618
    %v725 = vpop.permute.xlu0 %724
    %728 = vset.pattern.permute.xlu0 0
    %729 = vperm.xlu0 %728, %v619
    %v730 = vpop.permute.xlu0 %729
    %733 = vset.pattern.permute.xlu0 0
    %734 = vperm.xlu0 %733, %v620
    %v735 = vpop.permute.xlu0 %734
    %738 = vset.pattern.permute.xlu0 0
    %739 = vperm.xlu0 %738, %v621
    %v740 = vpop.permute.xlu0 %739
    %743 = vset.pattern.permute.xlu0 0
    %744 = vperm.xlu0 %743, %v622
    %v745 = vpop.permute.xlu0 %744
    %748 = vset.pattern.permute.xlu0 0
    %749 = vperm.xlu0 %748, %v623
    %v750 = vpop.permute.xlu0 %749
    %753 = vset.pattern.permute.xlu0 0
    %754 = vperm.xlu0 %753, %v624
    %v755 = vpop.permute.xlu0 %754
    %758 = vset.pattern.permute.xlu0 0
    %759 = vperm.xlu0 %758, %v625
    %v760 = vpop.permute.xlu0 %759
    %763 = vset.pattern.permute.xlu0 0
    %764 = vperm.xlu0 %763, %v626
    %v765 = vpop.permute.xlu0 %764
    %768 = vset.pattern.permute.xlu0 0
    %769 = vperm.xlu0 %768, %v627
    %v770 = vpop.permute.xlu0 %769
    %773 = vset.pattern.permute.xlu0 0
    %774 = vperm.xlu0 %773, %v628
    %v775 = vpop.permute.xlu0 %774
    %778 = vset.pattern.permute.xlu0 0
    %779 = vperm.xlu0 %778, %v629
    %v780 = vpop.permute.xlu0 %779
    %783 = vset.pattern.permute.xlu0 0
    %784 = vperm.xlu0 %783, %v630
    %v785 = vpop.permute.xlu0 %784
    %788 = vset.pattern.permute.xlu0 0
    %789 = vperm.xlu0 %788, %v631
    %v790 = vpop.permute.xlu0 %789
    %v792 = vmul.f32 %v568, %v635
    %v793 = vmul.f32 %v569, %v640
    %v794 = vmul.f32 %v570, %v645
    %v795 = vmul.f32 %v571, %v650
    %v796 = vmul.f32 %v572, %v655
    %v797 = vmul.f32 %v573, %v660
    %v798 = vmul.f32 %v574, %v665
    %v799 = vmul.f32 %v575, %v670
    %v800 = vmul.f32 %v576, %v675
    %v801 = vmul.f32 %v577, %v680
    %v802 = vmul.f32 %v578, %v685
    %v803 = vmul.f32 %v579, %v690
    %v804 = vmul.f32 %v580, %v695
    %v805 = vmul.f32 %v581, %v700
    %v806 = vmul.f32 %v582, %v705
    %v807 = vmul.f32 %v583, %v710
    %v808 = vmul.f32 %v584, %v715
    %v809 = vmul.f32 %v585, %v720
    %v810 = vmul.f32 %v586, %v725
    %v811 = vmul.f32 %v587, %v730
    %v812 = vmul.f32 %v588, %v735
    %v813 = vmul.f32 %v589, %v740
    %v814 = vmul.f32 %v590, %v745
    %v815 = vmul.f32 %v591, %v750
    %v816 = vmul.f32 %v592, %v755
    %v817 = vmul.f32 %v593, %v760
    %v818 = vmul.f32 %v594, %v765
    %v819 = vmul.f32 %v595, %v770
    %v820 = vmul.f32 %v596, %v775
    %v821 = vmul.f32 %v597, %v780
    %v822 = vmul.f32 %v598, %v785
    %v823 = vmul.f32 %v599, %v790
    %v824 = vadd.f32 %v792, %v793
    %v825 = vadd.f32 %v824, %v794
    %v826 = vadd.f32 %v825, %v795
    %v827 = vadd.f32 %v826, %v796
    %v828 = vadd.f32 %v827, %v797
    %v829 = vadd.f32 %v828, %v798
    %v830 = vadd.f32 %v829, %v799
    %v831 = vadd.f32 %v830, %v800
    %v832 = vadd.f32 %v831, %v801
    %v833 = vadd.f32 %v832, %v802
    %v834 = vadd.f32 %v833, %v803
    %v835 = vadd.f32 %v834, %v804
    %v836 = vadd.f32 %v835, %v805
    %v837 = vadd.f32 %v836, %v806
    %v838 = vadd.f32 %v837, %v807
    %v839 = vadd.f32 %v838, %v808
    %v840 = vadd.f32 %v839, %v809
    %v841 = vadd.f32 %v840, %v810
    %v842 = vadd.f32 %v841, %v811
    %v843 = vadd.f32 %v842, %v812
    %v844 = vadd.f32 %v843, %v813
    %v845 = vadd.f32 %v844, %v814
    %v846 = vadd.f32 %v845, %v815
    %v847 = vadd.f32 %v846, %v816
    %v848 = vadd.f32 %v847, %v817
    %v849 = vadd.f32 %v848, %v818
    %v850 = vadd.f32 %v849, %v819
    %v851 = vadd.f32 %v850, %v820
    %v852 = vadd.f32 %v851, %v821
    %v853 = vadd.f32 %v852, %v822
    %v854 = vadd.f32 %v853, %v823
    %v855 = vrot.slane %v854, 4
    %v856 = vadd.f32 %v854, %v855
    %v857 = vrot.slane %v856, 2
    %v858 = vadd.f32 %v856, %v857
    %v859 = vrot.slane %v858, 1
    %v860 = vadd.f32 %v858, %v859
    %s861 = sld [smem:[#allocation2]]
    %v862 = vstv %s861
    %v863 = vadd.f32 %v860, %v862
    %v864 = vsub.f32 0.0, %v863
    %v865 = vmul.f32 %v864, 1.442695
    %v866 = vpow.pop %v865
    %v867 = vadd.f32 %v866, 1.0
    %v868 = vrcp.pop %v867
    %869 = vst [vmem:[#allocation3] sm:$0x1] %v868
    // Predicated region
    $region22: #{tpu_custom_call.1} parent=1 // pred_check
      _
    $region23: #{tpu_custom_call.1} parent=1 // pred_check_branch
      %871 = sbr.rel (0) target = $region25
    $region24: #{tpu_custom_call.1} parent=1 // pred_region
      %s873 = ssub.s32 16, 16
      %874 = vsyncadd [#allocation4], %s873
      %s876 = sshll.u32 [#allocation3], 4
      %s877 = int_to_ptr.vmem [resolvable:$true] %s876
      %879 = dma.vmem_to_hbm [thread:$0]  %s877, 16, %s5, [#allocation4]
    $region25: #{tpu_custom_call.1} parent=1 // pred_fallthru
      _
    // Predicated region
    $region26: #{tpu_custom_call.1} parent=1 // pred_check
      _
    $region27: #{tpu_custom_call.1} parent=1 // pred_check_branch
      %881 = sbr.rel (0) target = $region29
    $region28: #{tpu_custom_call.1} parent=1 // pred_region
      %882 = dma.done [#allocation4], 16
    $region29: #{tpu_custom_call.1} parent=1 // pred_fallthru
      _
    %883 = vsyncpa [#allocation4], 1

</llo_original>
